<compile_context>
chip_gen: v7x
topology: tpu7x:2x2x1
jax: 0.10.0
libtpu: 0.0.40
codegen_flags: <defaults>
</compile_context>

<pallas_src>
import math

import jax
import jax.numpy as jnp
from jax import lax
from jax.experimental import pallas as pl
from jax.experimental.pallas import tpu as pltpu


_INV_SQRT2 = 0.7071067811865476


def _gelu_exact(x):
    # Matches torch.nn.GELU(approximate='none').
    return 0.5 * x * (1.0 + lax.erf(x * _INV_SQRT2))


def _round_up(n, m):
    return ((n + m - 1) // m) * m


def _choose_tile(batch, tile_b):
    """Lane-dense (128-multiple) batch tile; keep >= 2 grid steps if possible."""
    tile_b = max(128, (tile_b // 128) * 128)
    tile_b = min(tile_b, _round_up(batch, 128))      # don't over-pad tiny batches
    # Ensure at least 2 grid steps so the single 'parallel' batch axis feeds
    # both v7x TensorCores; per-step overhead (~0.35us) is negligible on the
    # single-TC v5e/v6e so the split is applied unconditionally.
    if _round_up(batch, tile_b) // tile_b < 2 and tile_b > 128:
        tile_b = max(128, _round_up(tile_b // 2, 128))
    return tile_b


def _vmem_limit_bytes(estimate):
    """Generation-aware VMEM budget: v7x has 64 MiB/TC (cap 48 MiB); v5e/v6e
    have 128 MiB (allow up to 96 MiB). Floor at the previously-validated 32 MiB."""
    try:
        kind = jax.devices()[0].device_kind.lower()
    except Exception:
        kind = ""
    cap = (48 if "v7" in kind else 96) * 1024 * 1024
    return int(min(cap, max(int(estimate), 32 * 1024 * 1024)))


# ---------------------------------------------------------------------------
# Folded kernel: s = x @ w_eff + b_eff -> GELU   (memory-bound optimum)
# ---------------------------------------------------------------------------
def _folded_kernel(x_ref, w_ref, b_ref, out_ref):
    # x_ref: (tile_b, D) VMEM (streamed) | w_ref: (D, 1) f32 VMEM (resident)
    # b_ref: (1, 1) f32 SMEM            | out_ref: (tile_b, 1) f32
    # Standard (M,K)@(K,N) orientation: one MXU pass, no operand transpose.
    x = x_ref[...]
    s = jnp.dot(x, w_ref[...].astype(x.dtype), preferred_element_type=jnp.float32)
    out_ref[...] = _gelu_exact(s + b_ref[0, 0]).astype(out_ref.dtype)


def fold_params(params, num_hidden):
    """Fold the activation-free Linear chain into (w_eff (D,1), b_eff (1,1)).

    Call ONCE per parameter set (hoisted out of the forward pass, per review)."""
    hp = lax.Precision.HIGHEST
    w_eff = params["wfc"]                                          # (D, 1)
    for li in reversed(range(num_hidden)):                         # mat-vec chain
        w_eff = jnp.dot(params[f"w{li}"], w_eff, precision=hp)     # (D, 1)
    b = None
    for li in range(num_hidden):
        b = (params[f"b{li}"] if b is None
             else jnp.dot(b, params[f"w{li}"], precision=hp) + params[f"b{li}"])
    b_eff = (params["bfc"] if b is None
             else jnp.dot(b, params["wfc"], precision=hp) + params["bfc"])
    return w_eff, b_eff                                            # (D,1), (1,1)


def ffnn_forward_folded(x, w_eff, b_eff, *, tile_b=1024, x_dtype=None):
    """FFNN(score=True) forward via folded weights. x: (B, D) -> (B,) f32.

    Optionally pass x_dtype=jnp.bfloat16 to halve streamed HBM bytes (~2x on
    the memory-bound folded path) at ~1e-3 relative error."""
    if x_dtype is not None and x.dtype != x_dtype:
        x = x.astype(x_dtype)
    B, D = x.shape
    tile_b = _choose_tile(B, tile_b)
    B_pad = _round_up(B, tile_b)
    if B_pad != B:                                   # pad batch, slice off later
        x = jnp.pad(x, ((0, B_pad - B), (0, 0)))
    grid = (B_pad // tile_b,)

    # Double-buffered x tile + lane-padded (tile_b,1) out + resident weights.
    est = 2 * tile_b * D * x.dtype.itemsize + 2 * tile_b * 512 + (1 << 22)

    out = pl.pallas_call(
        _folded_kernel,
        out_shape=jax.ShapeDtypeStruct((B_pad, 1), jnp.float32),
        grid=grid,
        in_specs=[
            pl.BlockSpec((tile_b, D), lambda i: (i, 0)),           # streamed x
            pl.BlockSpec((D, 1), lambda i: (0, 0)),                # w_eff column
            pl.BlockSpec(memory_space=pltpu.MemorySpace.SMEM),     # b_eff scalar
        ],
        out_specs=pl.BlockSpec((tile_b, 1), lambda i: (i, 0)),
        compiler_params=pltpu.CompilerParams(
            dimension_semantics=("parallel",),
            vmem_limit_bytes=_vmem_limit_bytes(est)),
    )(x, w_eff, b_eff)
    return out[:B, 0]                                # squeeze(1) + drop padding


# ---------------------------------------------------------------------------
# Layer-structured path (fold=False): bf16 MXU matmuls, f32 accumulation
# ---------------------------------------------------------------------------
def prepare_layer_params(params, num_hidden, dtype=jnp.bfloat16):
    """Pre-cast weights for the layer kernel (call ONCE; hoisted per review)."""
    args = []
    for li in range(num_hidden):
        args.append(params[f"w{li}"].astype(dtype))                # (D, D) bf16
        args.append(params[f"b{li}"])                              # (1, D) f32
    args.append(params["wfc"].astype(dtype))                       # (D, 1) bf16
    args.append(params["bfc"])                                     # (1, 1) f32
    return tuple(args)


def _make_layers_kernel(num_hidden):
    def kernel(*refs):
        # refs = [x, w0, b0, ..., w_{n-1}, b_{n-1}, wfc_col, bfc, out]
        x_ref = refs[0]
        wfc_ref = refs[1 + 2 * num_hidden]
        bfc_ref = refs[2 + 2 * num_hidden]
        out_ref = refs[-1]

        h = x_ref[...]
        for li in range(num_hidden):
            w_ref = refs[1 + 2 * li]
            b_ref = refs[2 + 2 * li]
            # bf16 operands, f32 accumulation on the MXU.
            h = jnp.dot(h.astype(w_ref.dtype), w_ref[...],
                        preferred_element_type=jnp.float32) + b_ref[...]

        # Final (D,1) projection also on the native bf16 MXU path; standard
        # (M,K)@(K,N) orientation -> no operand transpose, (tile_b,1) result.
        s = jnp.dot(h.astype(wfc_ref.dtype), wfc_ref[...],
                    preferred_element_type=jnp.float32)
        out_ref[...] = _gelu_exact(s + bfc_ref[0, 0]).astype(out_ref.dtype)
    return kernel


def ffnn_forward_layers(x, prepared, num_hidden, *, tile_b=1024):
    """FFNN(score=True) forward keeping the per-layer structure. -> (B,) f32."""
    B, D = x.shape
    tile_b = _choose_tile(B, tile_b)
    B_pad = _round_up(B, tile_b)
    if B_pad != B:
        x = jnp.pad(x, ((0, B_pad - B), (0, 0)))
    grid = (B_pad // tile_b,)
    wbytes = num_hidden * D * D * 2                  # bf16 hidden weights

    def build(single_buffer):
        def inv(shape):
            # Grid-invariant blocks: single-buffer to halve their VMEM cost.
            if single_buffer:
                return pl.BlockSpec(shape, lambda i: (0, 0),
                                    pipeline_mode=pl.Buffered(1))
            return pl.BlockSpec(shape, lambda i: (0, 0))

        in_specs = [pl.BlockSpec((tile_b, D), lambda i: (i, 0))]    # streamed x
        for _ in range(num_hidden):
            in_specs += [inv((D, D)), inv((1, D))]
        in_specs += [inv((D, 1)),
                     pl.BlockSpec(memory_space=pltpu.MemorySpace.SMEM)]

        bufs = 1 if single_buffer else 2
        est = (2 * tile_b * D * 4          # double-buffered x
               + 2 * tile_b * D * 4        # f32 intermediate h
               + bufs * wbytes             # resident bf16 weights
               + 2 * tile_b * 512          # lane-padded (tile_b,1) out buffers
               + (1 << 22))                # margin
        return pl.pallas_call(
            _make_layers_kernel(num_hidden),
            out_shape=jax.ShapeDtypeStruct((B_pad, 1), jnp.float32),
            grid=grid,
            in_specs=in_specs,
            out_specs=pl.BlockSpec((tile_b, 1), lambda i: (i, 0)),
            compiler_params=pltpu.CompilerParams(
                dimension_semantics=("parallel",),
                vmem_limit_bytes=_vmem_limit_bytes(est)))

    # Prefer single-buffered invariant weights (pl.Buffered(1)); fall back to
    # the default double-buffered specs if this Pallas build rejects it.
    try:
        out = build(single_buffer=True)(x, *prepared)
    except Exception:
        out = build(single_buffer=False)(x, *prepared)
    return out[:B, 0]


def ffnn_forward(x, params, num_hidden=3, *, tile_b=1024, fold=True):
    """Convenience wrapper. For repeated calls, hoist fold_params /
    prepare_layer_params once and call the *_folded / *_layers entry points."""
    if fold:
        w_eff, b_eff = fold_params(params, num_hidden)
        return ffnn_forward_folded(x, w_eff, b_eff, tile_b=tile_b)
    prepared = prepare_layer_params(params, num_hidden)
    return ffnn_forward_layers(x, prepared, num_hidden, tile_b=tile_b)


# ---------------------------------------------------------------------------
# Params / reference
# ---------------------------------------------------------------------------
def init_params(key, input_dim, num_hidden=3):
    """torch.nn.Linear-style init; weights stored pre-transposed as (in, out)."""
    params = {}
    bound = 1.0 / math.sqrt(input_dim)
    keys = jax.random.split(key, 2 * num_hidden + 2)
    for li in range(num_hidden):
        params[f"w{li}"] = jax.random.uniform(
            keys[2 * li], (input_dim, input_dim), jnp.float32, -bound, bound)
        params[f"b{li}"] = jax.random.uniform(
            keys[2 * li + 1], (1, input_dim), jnp.float32, -bound, bound)
    params["wfc"] = jax.random.uniform(
        keys[-2], (input_dim, 1), jnp.float32, -bound, bound)
    params["bfc"] = jax.random.uniform(
        keys[-1], (1, 1), jnp.float32, -bound, bound)
    return params


def ffnn_reference(x, params, num_hidden=3):
    hp = lax.Precision.HIGHEST
    h = x
    for li in range(num_hidden):
        h = jnp.dot(h, params[f"w{li}"], precision=hp) + params[f"b{li}"]
    s = jnp.dot(h, params["wfc"], precision=hp) + params["bfc"]
    return _gelu_exact(s)[:, 0]


if __name__ == "__main__":
    # Small demo shapes (module default is input_dim=768, num_layers=4).
    B, D, NUM_HIDDEN = 512, 256, 3
    key = jax.random.PRNGKey(0)
    kx, kp = jax.random.split(key)
    x = jax.random.normal(kx, (B, D), jnp.float32)
    params = init_params(kp, D, NUM_HIDDEN)

    ref = ffnn_reference(x, params, NUM_HIDDEN)

    # One-time parameter prep, hoisted out of the forward calls (per review).
    w_eff, b_eff = fold_params(params, NUM_HIDDEN)
    prepared = prepare_layer_params(params, NUM_HIDDEN)

    fwd_folded = jax.jit(lambda xi: ffnn_forward_folded(xi, w_eff, b_eff))
    fwd_layers = jax.jit(lambda xi: ffnn_forward_layers(xi, prepared, NUM_HIDDEN))

    # 1) Folded path (default): single memory-bound pass over x, f32 exact.
    out_fold = jax.block_until_ready(fwd_folded(x))
    assert out_fold.shape == (B,)
    assert jnp.allclose(out_fold, ref, atol=2e-4, rtol=2e-4), "folded path mismatch"

    # 2) Layer-structured path: bf16 MXU matmuls with f32 accumulation
    #    (looser tolerance vs the f32 reference, as noted in the review).
    out_layers = jax.block_until_ready(fwd_layers(x))
    assert out_layers.shape == (B,)
    assert jnp.allclose(out_layers, ref, atol=5e-2, rtol=5e-2), "layer path mismatch"

    print("KERNEL_OK")
</pallas_src>

<mosaic_0001>
module attributes {stable_mosaic.version = 11 : i64} {
  func.func @_folded_kernel(%arg0: i32, %arg1: memref<256x256xf32, #tpu.memory_space<vmem>>, %arg2: memref<256x1xf32, #tpu.memory_space<vmem>>, %arg3: memref<1x1xf32, #tpu.memory_space<smem>>, %arg4: memref<256x1xf32, #tpu.memory_space<vmem>>) attributes {dimension_semantics = [#tpu.dimension_semantics<parallel>], iteration_bounds = array<i64: 2>, scalar_prefetch = 0 : i64, scratch_operands = 0 : i64, tpu.core_type = #tpu.core_type<tc>, window_params = [{transform_indices = @transform_0, window_bounds = array<i64: 256, 256>}, {pipeline_mode = #tpu.pipeline_mode<synchronous>, transform_indices = @transform_1, window_bounds = array<i64: 256, 1>}, {transform_indices = @transform_2, window_bounds = array<i64: 1, 1>}, {transform_indices = @transform_3, window_bounds = array<i64: 256, 1>}]} {
    %c0 = arith.constant 0 : index
    %c0_0 = arith.constant 0 : index
    %0 = vector.load %arg1[%c0, %c0_0] : memref<256x256xf32, #tpu.memory_space<vmem>>, vector<256x256xf32>
    %c0_1 = arith.constant 0 : index
    %c0_2 = arith.constant 0 : index
    %1 = vector.load %arg2[%c0_1, %c0_2] : memref<256x1xf32, #tpu.memory_space<vmem>>, vector<256x1xf32>
    %cst = arith.constant dense<0.000000e+00> : vector<256x1xf32>
    %2 = tpu.matmul %0, %1, %cst {dimension_numbers = #tpu.dot_dimension_numbers<[1], [0], [0], [1], [0, 0, 1, 1], [], []>} : vector<256x256xf32>, vector<256x1xf32>, vector<256x1xf32> -> vector<256x1xf32>
    %c0_3 = arith.constant 0 : index
    %c0_4 = arith.constant 0 : index
    %3 = memref.load %arg3[%c0_3, %c0_4] : memref<1x1xf32, #tpu.memory_space<smem>>
    %4 = vector.broadcast %3 : f32 to vector<256x1xf32>
    %5 = arith.addf %2, %4 : vector<256x1xf32>
    %cst_5 = arith.constant 5.000000e-01 : f32
    %6 = vector.broadcast %cst_5 : f32 to vector<256x1xf32>
    %7 = arith.mulf %6, %5 : vector<256x1xf32>
    %cst_6 = arith.constant 0.707106769 : f32
    %8 = vector.broadcast %cst_6 : f32 to vector<256x1xf32>
    %9 = arith.mulf %5, %8 : vector<256x1xf32>
    %10 = math.erf %9 : vector<256x1xf32>
    %cst_7 = arith.constant 1.000000e+00 : f32
    %11 = vector.broadcast %cst_7 : f32 to vector<256x1xf32>
    %12 = arith.addf %11, %10 : vector<256x1xf32>
    %13 = arith.mulf %7, %12 : vector<256x1xf32>
    %c0_8 = arith.constant 0 : index
    %c0_9 = arith.constant 0 : index
    %14 = vector.load %arg4[%c0_8, %c0_9] : memref<256x1xf32, #tpu.memory_space<vmem>>, vector<256x1xf32>
    tpu.vector_store %arg4[%c0_8, %c0_9], %13 {strides = array<i32>} : memref<256x1xf32, #tpu.memory_space<vmem>>, vector<256x1xf32>,
    return
  }
  func.func @transform_0(%arg0: i32) -> (i32, i32) {
    %c0_i32 = arith.constant 0 : i32
    %c0_i32_0 = arith.constant 0 : i32
    return %arg0, %c0_i32 : i32, i32
  }
  func.func @transform_1(%arg0: i32) -> (i32, i32) {
    %c0_i32 = arith.constant 0 : i32
    %c0_i32_0 = arith.constant 0 : i32
    %c0_i32_1 = arith.constant 0 : i32
    return %c0_i32, %c0_i32_0 : i32, i32
  }
  func.func @transform_2(%arg0: i32) -> (i32, i32) {
    %c0_i32 = arith.constant 0 : i32
    %c0_i32_0 = arith.constant 0 : i32
    %c0_i32_1 = arith.constant 0 : i32
    return %c0_i32, %c0_i32_0 : i32, i32
  }
  func.func @transform_3(%arg0: i32) -> (i32, i32) {
    %c0_i32 = arith.constant 0 : i32
    %c0_i32_0 = arith.constant 0 : i32
    return %arg0, %c0_i32 : i32, i32
  }
}

</mosaic_0001>

<llo_original>
// kernel: _lambda_.1
$region0: #{_lambda_.1}
  #allocation0 [shape = 'u32[]', space=smem, size = 0x4, offset = 0x4, fixed_abs, tag = 'smem constant byte address 0x4 - core index']
  #allocation1 [shape = 'u32[144,128]{1,0:T(1,128)}', space=vmem, size = 0x12000, scoped, tag = 'internal scratch']
  #allocation2 [shape = 'f32[1,1]{1,0:T(1,128)S(6)}', space=smem, size = 0x200, scoped, tag = 'scoped memory for _lambda_.1']
  %s0 = inlined_call_operand.hbm [shape: f32[512,256], index: 0, kind: input, shape index: {}]
  %s1 = inlined_call_operand.hbm [shape: f32[256,1], index: 1, kind: input, shape index: {}]
  %s2 = inlined_call_operand.<no memory space> [shape: f32[1,1], index: 2, kind: input, shape index: {}]
  %s3 = inlined_call_operand.vmem [shape: f32[512,1], index: 3, kind: output, shape index: {}]
  %s4 = sld [smem:[#allocation0]]
  $region53: #{_lambda_.1} parent=0
    _
  %s6 = ssub.s32 1, %s4
  %s7 = scalar_select 0, %s6, %s4
  %8 = sst [smem:[#allocation2]] %s2
  $region1: #{_lambda_.1} parent=0
    #allocation3 [shape = 'u8[524288]{0}', space=vmem, size = 0x80000, scoped, tag = 'input window, operand 0']
    #allocation4 [shape = 's32[2]{0}', space=sflag, size = 0x8, scoped, tag = 'scoped memory for _lambda_.1']
    #allocation5 [shape = 'u8[131072]{0}', space=vmem, size = 0x20000, scoped, tag = 'input window, operand 1, single buffered']
    #allocation6 [shape = 's32[1]{0}', space=sflag, size = 0x4, scoped, tag = 'scoped memory for _lambda_.1']
    %9 = vsyncpa [#allocation4], 0
    %s10 = scalar_lea.sflag [#allocation4], 1
    %11 = vsyncpa %s10, 0
    %12 = vsyncpa [#allocation6], 0
    loop: start=0, step=1, limit=4
    $region2: #{_lambda_.1} parent=1 // loop_pre_header
      _
    $region3: #{_lambda_.1} parent=1 // loop_header
      %s14 = sphi 0, %s18
      %p15 = scmp.ge.s32.totalorder %s14, 4
      %s24 = sphi 0, %s26
      %s27 = sphi 0, %s24
      %s28 = sphi 0, %s27
      %s44 = sphi 0, %s28
      %s48 = sphi 0, %s48
      %s50 = sphi 0, %s48
      %s51 = sphi 0, %s50
      %s65 = sphi 0, %s51
      %s69 = sphi 0, %s69
      %s71 = sphi 0, %s69
      %s72 = sphi 0, %s71
      %s86 = sphi 0, %s72
      %s92 = sphi 0, %s94
      %s95 = sphi 0, %s92
      %s96 = sphi 0, %s95
      %s112 = sphi 0, %s96
    $region4: #{_lambda_.1} parent=1 // loop_header_branch
      %17 = sbr.rel (%p15) target = $region8
    $region5: #{_lambda_.1} parent=1 // loop_body
      %s19 = ssub.s32 %s14, 1
      %s20 = ssub.s32 %s14, 2
      %s21 = sadd.s32 %s14, 1
      %s22 = ssub.s32 %s14, %s21
      %p23 = scmp.eq.s32.totalorder %s22, 0
      %s25 = sadd.s32 %s24, 1
      %s26 = scalar_select %p23, %s24, %s25
      %p29 = pneg %p23
      %p30 = scmp.eq.s32.totalorder %s14, 1
      %p31 = por %p29, %p30
      %p32 = scmp.ne.s32.totalorder %s24, %s27
      %p33 = scmp.eq.s32.totalorder %s14, 0
      %p34 = por %p32, %p33
      %p35 = scmp.ne.s32.totalorder %s24, %s27
      %p36 = scmp.eq.s32.totalorder %s19, 1
      %p37 = por %p35, %p36
      %p38 = scmp.ne.s32.totalorder %s27, %s28
      %p39 = scmp.eq.s32.totalorder %s19, 0
      %p40 = por %p38, %p39
      %p41 = scmp.ne.s32.totalorder %s27, %s28
      %p42 = scmp.eq.s32.totalorder %s20, 1
      %p43 = por %p41, %p42
      %p45 = scmp.ne.s32.totalorder %s28, %s44
      %p46 = scmp.eq.s32.totalorder %s20, 0
      %p47 = por %p45, %p46
      %s49 = sadd.s32 %s48, 1
      %p52 = scmp.eq.s32.totalorder %s14, 1
      %p53 = scmp.ne.s32.totalorder %s48, %s50
      %p54 = scmp.eq.s32.totalorder %s14, 0
      %p55 = por %p53, %p54
      %p56 = scmp.ne.s32.totalorder %s48, %s50
      %p57 = scmp.eq.s32.totalorder %s19, 1
      %p58 = por %p56, %p57
      %p59 = scmp.ne.s32.totalorder %s50, %s51
      %p60 = scmp.eq.s32.totalorder %s19, 0
      %p61 = por %p59, %p60
      %p62 = scmp.ne.s32.totalorder %s50, %s51
      %p63 = scmp.eq.s32.totalorder %s20, 1
      %p64 = por %p62, %p63
      %p66 = scmp.ne.s32.totalorder %s51, %s65
      %p67 = scmp.eq.s32.totalorder %s20, 0
      %p68 = por %p66, %p67
      %s70 = sadd.s32 %s69, 1
      %p73 = scmp.eq.s32.totalorder %s14, 1
      %p74 = scmp.ne.s32.totalorder %s69, %s71
      %p75 = scmp.eq.s32.totalorder %s14, 0
      %p76 = por %p74, %p75
      %p77 = scmp.ne.s32.totalorder %s69, %s71
      %p78 = scmp.eq.s32.totalorder %s19, 1
      %p79 = por %p77, %p78
      %p80 = scmp.ne.s32.totalorder %s71, %s72
      %p81 = scmp.eq.s32.totalorder %s19, 0
      %p82 = por %p80, %p81
      %p83 = scmp.ne.s32.totalorder %s71, %s72
      %p84 = scmp.eq.s32.totalorder %s20, 1
      %p85 = por %p83, %p84
      %p87 = scmp.ne.s32.totalorder %s72, %s86
      %p88 = scmp.eq.s32.totalorder %s20, 0
      %p89 = por %p87, %p88
      %s90 = ssub.s32 %s14, %s21
      %p91 = scmp.eq.s32.totalorder %s90, 0
      %s93 = sadd.s32 %s92, 1
      %s94 = scalar_select %p91, %s92, %s93
      %p97 = pneg %p91
      %p98 = scmp.eq.s32.totalorder %s14, 1
      %p99 = por %p97, %p98
      %p100 = scmp.ne.s32.totalorder %s92, %s95
      %p101 = scmp.eq.s32.totalorder %s14, 0
      %p102 = por %p100, %p101
      %p103 = scmp.ne.s32.totalorder %s92, %s95
      %p104 = scmp.eq.s32.totalorder %s19, 1
      %p105 = por %p103, %p104
      %p106 = scmp.ne.s32.totalorder %s95, %s96
      %p107 = scmp.eq.s32.totalorder %s19, 0
      %p108 = por %p106, %p107
      %p109 = scmp.ne.s32.totalorder %s95, %s96
      %p110 = scmp.eq.s32.totalorder %s20, 1
      %p111 = por %p109, %p110
      %p113 = scmp.ne.s32.totalorder %s96, %s112
      %p114 = scmp.eq.s32.totalorder %s20, 0
      %p115 = por %p113, %p114
      %p116 = scmp.le.s32.totalorder 1, %s14
      %p117 = scmp.lt.s32.totalorder %s14, 3
      %p118 = pnand %p116, %p117
      %p119 = pneg %p118
      // Predicated region
      $region9: #{_lambda_.1} parent=5 // pred_check
        _
      $region10: #{_lambda_.1} parent=5 // pred_check_branch
        %121 = sbr.rel (%p118) target = $region12
      $region11: #{_lambda_.1} parent=5 // pred_region
        %s122 = ssub.s32 %s14, 1
        // Predicated region
        $region13: #{_lambda_.1} parent=11 // pred_check
          %p123 = pneg %p61
        $region14: #{_lambda_.1} parent=11 // pred_check_branch
          %125 = sbr.rel (%p123) target = $region16
        $region15: #{_lambda_.1} parent=11 // pred_region
          %s127 = ssub.s32 4096, 4096
          %128 = vsyncadd [#allocation6], %s127
          %s129 = sshll.u32 [#allocation5], 4
          %s130 = int_to_ptr.vmem [resolvable:$true] %s129
          %135 = dma.hbm_to_vmem [thread:$0]  %s1, 4096, %s130, [#allocation6], 128, 128, 8
        $region16: #{_lambda_.1} parent=11 // pred_fallthru
          _
        // Predicated region
        $region17: #{_lambda_.1} parent=11 // pred_check
          %p136 = pneg %p82
        $region18: #{_lambda_.1} parent=11 // pred_check_branch
          %138 = sbr.rel (%p136) target = $region20
        $region19: #{_lambda_.1} parent=11 // pred_region
          _
        $region20: #{_lambda_.1} parent=11 // pred_fallthru
          _
      $region12: #{_lambda_.1} parent=5 // pred_fallthru
        _
      %p139 = scmp.lt.s32.totalorder %s14, 2
      // Predicated region
      $region21: #{_lambda_.1} parent=5 // pred_check
        %p140 = pneg %p139
      $region22: #{_lambda_.1} parent=5 // pred_check_branch
        %142 = sbr.rel (%p140) target = $region24
      $region23: #{_lambda_.1} parent=5 // pred_region
        // Predicated region
        $region25: #{_lambda_.1} parent=23 // pred_check
          %p143 = pneg %p34
        $region26: #{_lambda_.1} parent=23 // pred_check_branch
          %145 = sbr.rel (%p143) target = $region28
        $region27: #{_lambda_.1} parent=23 // pred_region
          %s146 = sand.u32 %s24, 1
          %s147 = scalar_lea.sflag [#allocation4], %s146
          %s148 = sand.u32 %s24, 1
          %s149 = smul.addr %s148, 512
          %s150 = scalar_lea.vmem [#allocation3], %s149
          %s151 = smul.u32 32, %s14
          %s153 = ssub.s32 8192, 8192
          %154 = vsyncadd %s147, %s153
          %s155 = smul.addr %s151, 2
          %s156 = smul.addr %s155, 128
          %s157 = scalar_lea.hbm %s0, %s156
          %s158 = sshll.u32 %s150, 4
          %s159 = int_to_ptr.vmem [resolvable:$true] %s158
          %164 = dma.hbm_to_vmem [thread:$0]  %s157, 8192, %s159, %s147, 256, 256, 16
        $region28: #{_lambda_.1} parent=23 // pred_fallthru
          _
      $region24: #{_lambda_.1} parent=5 // pred_fallthru
        _
      %p165 = scmp.le.s32.totalorder 1, %s14
      %p166 = scmp.lt.s32.totalorder %s14, 3
      %p167 = pnand %p165, %p166
      %p168 = pneg %p167
      // Predicated region
      $region29: #{_lambda_.1} parent=5 // pred_check
        _
      $region30: #{_lambda_.1} parent=5 // pred_check_branch
        %170 = sbr.rel (%p167) target = $region32
      $region31: #{_lambda_.1} parent=5 // pred_region
        %s171 = ssub.s32 %s14, 1
        %s172 = sand.u32 %s27, 1
        %s173 = scalar_lea.sflag [#allocation4], %s172
        %s174 = sand.u32 %s27, 1
        %s175 = smul.addr %s174, 512
        %s176 = scalar_lea.vmem [#allocation3], %s175
        // Predicated region
        $region33: #{_lambda_.1} parent=31 // pred_check
          %p177 = pneg %p40
        $region34: #{_lambda_.1} parent=31 // pred_check_branch
          %179 = sbr.rel (%p177) target = $region36
        $region35: #{_lambda_.1} parent=31 // pred_region
          %180 = dma.done %s173, 8192
        $region36: #{_lambda_.1} parent=31 // pred_fallthru
          _
        // Predicated region
        $region37: #{_lambda_.1} parent=31 // pred_check
          %p181 = pneg %p61
        $region38: #{_lambda_.1} parent=31 // pred_check_branch
          %183 = sbr.rel (%p181) target = $region40
        $region39: #{_lambda_.1} parent=31 // pred_region
          %184 = dma.done [#allocation6], 4096
        $region40: #{_lambda_.1} parent=31 // pred_fallthru
          _
        %s185 = sand.u32 %s27, 1
        %s186 = scalar_lea.sflag [#allocation4], %s185
        %s187 = sand.u32 %s27, 1
        %s188 = smul.addr %s187, 512
        %s189 = scalar_lea.vmem [#allocation3], %s188
        %p190 = pneg %p40
        %p191 = pneg %p37
        %p192 = pneg %p61
        %p193 = pneg %p58
        %p194 = pneg %p82
        %p195 = pneg %p79
        %p196 = pneg %p108
        %p197 = pneg %p105
        %s198 = smul.u32 32, %s19
        %p199 = scmp.lt.s32.totalorder %s198, 63
        %s200 = scalar_select %p199, %s198, 63
        %s201 = smul.addr %s200, 8
        %s202 = scalar_lea.vmem %s3, %s201
        %s203 = smul.u32 32, %s19
        %s204 = smul.u32 32, %s19
        %p205 = scmp.lt.s32.totalorder %s204, 63
        %s206 = scalar_select %p205, %s204, 63
        %s207 = smul.addr %s206, 8
        %s208 = scalar_lea.vmem %s3, %s207
        %s209 = smul.u32 32, %s19
        %v210 = vld [vmem:[%s176] sm:$0xff]
        %v211 = vld [vmem:[%s176 + $0x8] sm:$0xff]
        %v212 = vld [vmem:[%s176 + $0x10] sm:$0xff]
        %v213 = vld [vmem:[%s176 + $0x18] sm:$0xff]
        %v214 = vld [vmem:[%s176 + $0x20] sm:$0xff]
        %v215 = vld [vmem:[%s176 + $0x28] sm:$0xff]
        %v216 = vld [vmem:[%s176 + $0x30] sm:$0xff]
        %v217 = vld [vmem:[%s176 + $0x38] sm:$0xff]
        %v218 = vld [vmem:[%s176 + $0x40] sm:$0xff]
        %v219 = vld [vmem:[%s176 + $0x48] sm:$0xff]
        %v220 = vld [vmem:[%s176 + $0x50] sm:$0xff]
        %v221 = vld [vmem:[%s176 + $0x58] sm:$0xff]
        %v222 = vld [vmem:[%s176 + $0x60] sm:$0xff]
        %v223 = vld [vmem:[%s176 + $0x68] sm:$0xff]
        %v224 = vld [vmem:[%s176 + $0x70] sm:$0xff]
        %v225 = vld [vmem:[%s176 + $0x78] sm:$0xff]
        %v226 = vld [vmem:[%s176 + $0x80] sm:$0xff]
        %v227 = vld [vmem:[%s176 + $0x88] sm:$0xff]
        %v228 = vld [vmem:[%s176 + $0x90] sm:$0xff]
        %v229 = vld [vmem:[%s176 + $0x98] sm:$0xff]
        %v230 = vld [vmem:[%s176 + $0xa0] sm:$0xff]
        %v231 = vld [vmem:[%s176 + $0xa8] sm:$0xff]
        %v232 = vld [vmem:[%s176 + $0xb0] sm:$0xff]
        %v233 = vld [vmem:[%s176 + $0xb8] sm:$0xff]
        %v234 = vld [vmem:[%s176 + $0xc0] sm:$0xff]
        %v235 = vld [vmem:[%s176 + $0xc8] sm:$0xff]
        %v236 = vld [vmem:[%s176 + $0xd0] sm:$0xff]
        %v237 = vld [vmem:[%s176 + $0xd8] sm:$0xff]
        %v238 = vld [vmem:[%s176 + $0xe0] sm:$0xff]
        %v239 = vld [vmem:[%s176 + $0xe8] sm:$0xff]
        %v240 = vld [vmem:[%s176 + $0xf0] sm:$0xff]
        %v241 = vld [vmem:[%s176 + $0xf8] sm:$0xff]
        %v242 = vld [vmem:[%s176 + $0x100] sm:$0xff]
        %v243 = vld [vmem:[%s176 + $0x108] sm:$0xff]
        %v244 = vld [vmem:[%s176 + $0x110] sm:$0xff]
        %v245 = vld [vmem:[%s176 + $0x118] sm:$0xff]
        %v246 = vld [vmem:[%s176 + $0x120] sm:$0xff]
        %v247 = vld [vmem:[%s176 + $0x128] sm:$0xff]
        %v248 = vld [vmem:[%s176 + $0x130] sm:$0xff]
        %v249 = vld [vmem:[%s176 + $0x138] sm:$0xff]
        %v250 = vld [vmem:[%s176 + $0x140] sm:$0xff]
        %v251 = vld [vmem:[%s176 + $0x148] sm:$0xff]
        %v252 = vld [vmem:[%s176 + $0x150] sm:$0xff]
        %v253 = vld [vmem:[%s176 + $0x158] sm:$0xff]
        %v254 = vld [vmem:[%s176 + $0x160] sm:$0xff]
        %v255 = vld [vmem:[%s176 + $0x168] sm:$0xff]
        %v256 = vld [vmem:[%s176 + $0x170] sm:$0xff]
        %v257 = vld [vmem:[%s176 + $0x178] sm:$0xff]
        %v258 = vld [vmem:[%s176 + $0x180] sm:$0xff]
        %v259 = vld [vmem:[%s176 + $0x188] sm:$0xff]
        %v260 = vld [vmem:[%s176 + $0x190] sm:$0xff]
        %v261 = vld [vmem:[%s176 + $0x198] sm:$0xff]
        %v262 = vld [vmem:[%s176 + $0x1a0] sm:$0xff]
        %v263 = vld [vmem:[%s176 + $0x1a8] sm:$0xff]
        %v264 = vld [vmem:[%s176 + $0x1b0] sm:$0xff]
        %v265 = vld [vmem:[%s176 + $0x1b8] sm:$0xff]
        %v266 = vld [vmem:[%s176 + $0x1c0] sm:$0xff]
        %v267 = vld [vmem:[%s176 + $0x1c8] sm:$0xff]
        %v268 = vld [vmem:[%s176 + $0x1d0] sm:$0xff]
        %v269 = vld [vmem:[%s176 + $0x1d8] sm:$0xff]
        %v270 = vld [vmem:[%s176 + $0x1e0] sm:$0xff]
        %v271 = vld [vmem:[%s176 + $0x1e8] sm:$0xff]
        %v272 = vld [vmem:[%s176 + $0x1f0] sm:$0xff]
        %v273 = vld [vmem:[%s176 + $0x1f8] sm:$0xff]
        %v274 = vld [vmem:[#allocation5] sm:$0xff]
        %v275 = vld [vmem:[#allocation5 + $0x8] sm:$0xff]
        %v276 = vld [vmem:[#allocation5 + $0x10] sm:$0xff]
        %v277 = vld [vmem:[#allocation5 + $0x18] sm:$0xff]
        %v278 = vld [vmem:[#allocation5 + $0x20] sm:$0xff]
        %v279 = vld [vmem:[#allocation5 + $0x28] sm:$0xff]
        %v280 = vld [vmem:[#allocation5 + $0x30] sm:$0xff]
        %v281 = vld [vmem:[#allocation5 + $0x38] sm:$0xff]
        %v282 = vld [vmem:[#allocation5 + $0x40] sm:$0xff]
        %v283 = vld [vmem:[#allocation5 + $0x48] sm:$0xff]
        %v284 = vld [vmem:[#allocation5 + $0x50] sm:$0xff]
        %v285 = vld [vmem:[#allocation5 + $0x58] sm:$0xff]
        %v286 = vld [vmem:[#allocation5 + $0x60] sm:$0xff]
        %v287 = vld [vmem:[#allocation5 + $0x68] sm:$0xff]
        %v288 = vld [vmem:[#allocation5 + $0x70] sm:$0xff]
        %v289 = vld [vmem:[#allocation5 + $0x78] sm:$0xff]
        %v290 = vld [vmem:[#allocation5 + $0x80] sm:$0xff]
        %v291 = vld [vmem:[#allocation5 + $0x88] sm:$0xff]
        %v292 = vld [vmem:[#allocation5 + $0x90] sm:$0xff]
        %v293 = vld [vmem:[#allocation5 + $0x98] sm:$0xff]
        %v294 = vld [vmem:[#allocation5 + $0xa0] sm:$0xff]
        %v295 = vld [vmem:[#allocation5 + $0xa8] sm:$0xff]
        %v296 = vld [vmem:[#allocation5 + $0xb0] sm:$0xff]
        %v297 = vld [vmem:[#allocation5 + $0xb8] sm:$0xff]
        %v298 = vld [vmem:[#allocation5 + $0xc0] sm:$0xff]
        %v299 = vld [vmem:[#allocation5 + $0xc8] sm:$0xff]
        %v300 = vld [vmem:[#allocation5 + $0xd0] sm:$0xff]
        %v301 = vld [vmem:[#allocation5 + $0xd8] sm:$0xff]
        %v302 = vld [vmem:[#allocation5 + $0xe0] sm:$0xff]
        %v303 = vld [vmem:[#allocation5 + $0xe8] sm:$0xff]
        %v304 = vld [vmem:[#allocation5 + $0xf0] sm:$0xff]
        %v305 = vld [vmem:[#allocation5 + $0xf8] sm:$0xff]
        %s306 = sld [smem:[#allocation2]]
        %v307 = vstv %s306
        %308 = vmatprep.subr.mxu0 0.0
        %309 = vmatpush1.msra.mxu0 %v274
        %310 = vmatprep.subr.mxu0 0.0
        %311 = vmatpush1.msra.mxu0 %v275
        %312 = vmatprep.subr.mxu0 0.0
        %313 = vmatpush1.msra.mxu0 %v276
        %314 = vmatprep.subr.mxu0 0.0
        %315 = vmatpush1.msra.mxu0 %v277
        %316 = vmatprep.subr.mxu0 0.0
        %317 = vmatpush1.msra.mxu0 %v278
        %318 = vmatprep.subr.mxu0 0.0
        %319 = vmatpush1.msra.mxu0 %v279
        %320 = vmatprep.subr.mxu0 0.0
        %321 = vmatpush1.msra.mxu0 %v280
        %322 = vmatprep.subr.mxu0 0.0
        %323 = vmatpush1.msra.mxu0 %v281
        %324 = vmatprep.subr.mxu0 0.0
        %325 = vmatpush1.msra.mxu0 %v282
        %326 = vmatprep.subr.mxu0 0.0
        %327 = vmatpush1.msra.mxu0 %v283
        %328 = vmatprep.subr.mxu0 0.0
        %329 = vmatpush1.msra.mxu0 %v284
        %330 = vmatprep.subr.mxu0 0.0
        %331 = vmatpush1.msra.mxu0 %v285
        %332 = vmatprep.subr.mxu0 0.0
        %333 = vmatpush1.msra.mxu0 %v286
        %334 = vmatprep.subr.mxu0 0.0
        %335 = vmatpush1.msra.mxu0 %v287
        %336 = vmatprep.subr.mxu0 0.0
        %337 = vmatpush1.msra.mxu0 %v288
        %338 = vmatprep.subr.mxu0 0.0
        %339 = vmatpush1.msra.mxu0 %v289
        %340 = vmatprep.subr.mxu0 0.0
        %341 = vmatpush1.msra.mxu0 %v290
        %342 = vmatprep.subr.mxu0 0.0
        %343 = vmatpush1.msra.mxu0 %v291
        %344 = vmatprep.subr.mxu0 0.0
        %345 = vmatpush1.msra.mxu0 %v292
        %346 = vmatprep.subr.mxu0 0.0
        %347 = vmatpush1.msra.mxu0 %v293
        %348 = vmatprep.subr.mxu0 0.0
        %349 = vmatpush1.msra.mxu0 %v294
        %350 = vmatprep.subr.mxu0 0.0
        %351 = vmatpush1.msra.mxu0 %v295
        %352 = vmatprep.subr.mxu0 0.0
        %353 = vmatpush1.msra.mxu0 %v296
        %354 = vmatprep.subr.mxu0 0.0
        %355 = vmatpush1.msra.mxu0 %v297
        %356 = vmatprep.subr.mxu0 0.0
        %357 = vmatpush1.msra.mxu0 %v298
        %358 = vmatprep.subr.mxu0 0.0
        %359 = vmatpush1.msra.mxu0 %v299
        %360 = vmatprep.subr.mxu0 0.0
        %361 = vmatpush1.msra.mxu0 %v300
        %362 = vmatprep.subr.mxu0 0.0
        %363 = vmatpush1.msra.mxu0 %v301
        %364 = vmatprep.subr.mxu0 0.0
        %365 = vmatpush1.msra.mxu0 %v302
        %366 = vmatprep.subr.mxu0 0.0
        %367 = vmatpush1.msra.mxu0 %v303
        %368 = vmatprep.subr.mxu0 0.0
        %369 = vmatpush1.msra.mxu0 %v304
        %370 = vmatprep.subr.mxu0 0.0
        %371 = vmatpush1.msra.mxu0 %v305
        %372 = vmatprep.mubr.f32.mxu0 %v211
        %373 = vmatmul.mubr.f32.gmra.mrb[0].mxu0 %v210
        %v374 = vpop.f32.mrb[0].mxu0
        %v375 = vadd.f32 %v307, %v374
        %v376 = vpop.f32.mrb[0].mxu0
        %377 = vmatprep.mubr.f32.mxu0 %v213
        %378 = vmatmul.mubr.f32.gmra.mrb[0].mxu0 %v212
        %v379 = vpop.f32.mrb[0].mxu0
        %v380 = vadd.f32 %v307, %v379
        %v381 = vpop.f32.mrb[0].mxu0
        %382 = vmatprep.mubr.f32.mxu0 %v215
        %383 = vmatmul.mubr.f32.gmra.mrb[0].mxu0 %v214
        %v384 = vpop.f32.mrb[0].mxu0
        %v385 = vadd.f32 %v307, %v384
        %v386 = vpop.f32.mrb[0].mxu0
        %387 = vmatprep.mubr.f32.mxu0 %v217
        %388 = vmatmul.mubr.f32.gmra.mrb[0].mxu0 %v216
        %v389 = vpop.f32.mrb[0].mxu0
        %v390 = vadd.f32 %v307, %v389
        %v391 = vpop.f32.mrb[0].mxu0
        %392 = vmatprep.mubr.f32.mxu0 %v219
        %393 = vmatmul.mubr.f32.gmra.mrb[0].mxu0 %v218
        %v394 = vpop.f32.mrb[0].mxu0
        %v395 = vadd.f32 %v307, %v394
        %v396 = vpop.f32.mrb[0].mxu0
        %397 = vmatprep.mubr.f32.mxu0 %v221
        %398 = vmatmul.mubr.f32.gmra.mrb[0].mxu0 %v220
        %v399 = vpop.f32.mrb[0].mxu0
        %v400 = vadd.f32 %v307, %v399
        %v401 = vpop.f32.mrb[0].mxu0
        %402 = vmatprep.mubr.f32.mxu0 %v223
        %403 = vmatmul.mubr.f32.gmra.mrb[0].mxu0 %v222
        %v404 = vpop.f32.mrb[0].mxu0
        %v405 = vadd.f32 %v307, %v404
        %v406 = vpop.f32.mrb[0].mxu0
        %407 = vmatprep.mubr.f32.mxu0 %v225
        %408 = vmatmul.mubr.f32.gmra.mrb[0].mxu0 %v224
        %v409 = vpop.f32.mrb[0].mxu0
        %v410 = vadd.f32 %v307, %v409
        %v411 = vpop.f32.mrb[0].mxu0
        %412 = vmatprep.mubr.f32.mxu0 %v227
        %413 = vmatmul.mubr.f32.gmra.mrb[0].mxu0 %v226
        %v414 = vpop.f32.mrb[0].mxu0
        %v415 = vadd.f32 %v307, %v414
        %v416 = vpop.f32.mrb[0].mxu0
        %417 = vmatprep.mubr.f32.mxu0 %v229
        %418 = vmatmul.mubr.f32.gmra.mrb[0].mxu0 %v228
        %v419 = vpop.f32.mrb[0].mxu0
        %v420 = vadd.f32 %v307, %v419
        %v421 = vpop.f32.mrb[0].mxu0
        %422 = vmatprep.mubr.f32.mxu0 %v231
        %423 = vmatmul.mubr.f32.gmra.mrb[0].mxu0 %v230
        %v424 = vpop.f32.mrb[0].mxu0
        %v425 = vadd.f32 %v307, %v424
        %v426 = vpop.f32.mrb[0].mxu0
        %427 = vmatprep.mubr.f32.mxu0 %v233
        %428 = vmatmul.mubr.f32.gmra.mrb[0].mxu0 %v232
        %v429 = vpop.f32.mrb[0].mxu0
        %v430 = vadd.f32 %v307, %v429
        %v431 = vpop.f32.mrb[0].mxu0
        %432 = vmatprep.mubr.f32.mxu0 %v235
        %433 = vmatmul.mubr.f32.gmra.mrb[0].mxu0 %v234
        %v434 = vpop.f32.mrb[0].mxu0
        %v435 = vadd.f32 %v307, %v434
        %v436 = vpop.f32.mrb[0].mxu0
        %437 = vmatprep.mubr.f32.mxu0 %v237
        %438 = vmatmul.mubr.f32.gmra.mrb[0].mxu0 %v236
        %v439 = vpop.f32.mrb[0].mxu0
        %v440 = vadd.f32 %v307, %v439
        %v441 = vpop.f32.mrb[0].mxu0
        %442 = vmatprep.mubr.f32.mxu0 %v239
        %443 = vmatmul.mubr.f32.gmra.mrb[0].mxu0 %v238
        %v444 = vpop.f32.mrb[0].mxu0
        %v445 = vadd.f32 %v307, %v444
        %v446 = vpop.f32.mrb[0].mxu0
        %447 = vmatprep.mubr.f32.mxu0 %v241
        %448 = vmatmul.mubr.f32.gmra.mrb[0].mxu0 %v240
        %v449 = vpop.f32.mrb[0].mxu0
        %v450 = vadd.f32 %v307, %v449
        %v451 = vpop.f32.mrb[0].mxu0
        %452 = vmatprep.mubr.f32.mxu0 %v243
        %453 = vmatmul.mubr.f32.gmra.mrb[0].mxu0 %v242
        %v454 = vpop.f32.mrb[0].mxu0
        %v455 = vadd.f32 %v307, %v454
        %v456 = vpop.f32.mrb[0].mxu0
        %457 = vmatprep.mubr.f32.mxu0 %v245
        %458 = vmatmul.mubr.f32.gmra.mrb[0].mxu0 %v244
        %v459 = vpop.f32.mrb[0].mxu0
        %v460 = vadd.f32 %v307, %v459
        %v461 = vpop.f32.mrb[0].mxu0
        %462 = vmatprep.mubr.f32.mxu0 %v247
        %463 = vmatmul.mubr.f32.gmra.mrb[0].mxu0 %v246
        %v464 = vpop.f32.mrb[0].mxu0
        %v465 = vadd.f32 %v307, %v464
        %v466 = vpop.f32.mrb[0].mxu0
        %467 = vmatprep.mubr.f32.mxu0 %v249
        %468 = vmatmul.mubr.f32.gmra.mrb[0].mxu0 %v248
        %v469 = vpop.f32.mrb[0].mxu0
        %v470 = vadd.f32 %v307, %v469
        %v471 = vpop.f32.mrb[0].mxu0
        %472 = vmatprep.mubr.f32.mxu0 %v251
        %473 = vmatmul.mubr.f32.gmra.mrb[0].mxu0 %v250
        %v474 = vpop.f32.mrb[0].mxu0
        %v475 = vadd.f32 %v307, %v474
        %v476 = vpop.f32.mrb[0].mxu0
        %477 = vmatprep.mubr.f32.mxu0 %v253
        %478 = vmatmul.mubr.f32.gmra.mrb[0].mxu0 %v252
        %v479 = vpop.f32.mrb[0].mxu0
        %v480 = vadd.f32 %v307, %v479
        %v481 = vpop.f32.mrb[0].mxu0
        %482 = vmatprep.mubr.f32.mxu0 %v255
        %483 = vmatmul.mubr.f32.gmra.mrb[0].mxu0 %v254
        %v484 = vpop.f32.mrb[0].mxu0
        %v485 = vadd.f32 %v307, %v484
        %v486 = vpop.f32.mrb[0].mxu0
        %487 = vmatprep.mubr.f32.mxu0 %v257
        %488 = vmatmul.mubr.f32.gmra.mrb[0].mxu0 %v256
        %v489 = vpop.f32.mrb[0].mxu0
        %v490 = vadd.f32 %v307, %v489
        %v491 = vpop.f32.mrb[0].mxu0
        %492 = vmatprep.mubr.f32.mxu0 %v259
        %493 = vmatmul.mubr.f32.gmra.mrb[0].mxu0 %v258
        %v494 = vpop.f32.mrb[0].mxu0
        %v495 = vadd.f32 %v307, %v494
        %v496 = vpop.f32.mrb[0].mxu0
        %497 = vmatprep.mubr.f32.mxu0 %v261
        %498 = vmatmul.mubr.f32.gmra.mrb[0].mxu0 %v260
        %v499 = vpop.f32.mrb[0].mxu0
        %v500 = vadd.f32 %v307, %v499
        %v501 = vpop.f32.mrb[0].mxu0
        %502 = vmatprep.mubr.f32.mxu0 %v263
        %503 = vmatmul.mubr.f32.gmra.mrb[0].mxu0 %v262
        %v504 = vpop.f32.mrb[0].mxu0
        %v505 = vadd.f32 %v307, %v504
        %v506 = vpop.f32.mrb[0].mxu0
        %507 = vmatprep.mubr.f32.mxu0 %v265
        %508 = vmatmul.mubr.f32.gmra.mrb[0].mxu0 %v264
        %v509 = vpop.f32.mrb[0].mxu0
        %v510 = vadd.f32 %v307, %v509
        %v511 = vpop.f32.mrb[0].mxu0
        %512 = vmatprep.mubr.f32.mxu0 %v267
        %513 = vmatmul.mubr.f32.gmra.mrb[0].mxu0 %v266
        %v514 = vpop.f32.mrb[0].mxu0
        %v515 = vadd.f32 %v307, %v514
        %v516 = vpop.f32.mrb[0].mxu0
        %517 = vmatprep.mubr.f32.mxu0 %v269
        %518 = vmatmul.mubr.f32.gmra.mrb[0].mxu0 %v268
        %v519 = vpop.f32.mrb[0].mxu0
        %v520 = vadd.f32 %v307, %v519
        %v521 = vpop.f32.mrb[0].mxu0
        %522 = vmatprep.mubr.f32.mxu0 %v271
        %523 = vmatmul.mubr.f32.gmra.mrb[0].mxu0 %v270
        %v524 = vpop.f32.mrb[0].mxu0
        %v525 = vadd.f32 %v307, %v524
        %v526 = vpop.f32.mrb[0].mxu0
        %527 = vmatprep.mubr.f32.mxu0 %v273
        %528 = vmatmul.mubr.f32.gmra.mrb[0].mxu0 %v272
        %v529 = vpop.f32.mrb[0].mxu0
        %v530 = vadd.f32 %v307, %v529
        %v531 = vpop.f32.mrb[0].mxu0
        %532 = vdwg.mxu0
        %v533 = vmul.f32 %v375, 0.5
        %v534 = vmul.f32 %v380, 0.5
        %v535 = vmul.f32 %v385, 0.5
        %v536 = vmul.f32 %v390, 0.5
        %v537 = vmul.f32 %v395, 0.5
        %v538 = vmul.f32 %v400, 0.5
        %v539 = vmul.f32 %v405, 0.5
        %v540 = vmul.f32 %v410, 0.5
        %v541 = vmul.f32 %v415, 0.5
        %v542 = vmul.f32 %v420, 0.5
        %v543 = vmul.f32 %v425, 0.5
        %v544 = vmul.f32 %v430, 0.5
        %v545 = vmul.f32 %v435, 0.5
        %v546 = vmul.f32 %v440, 0.5
        %v547 = vmul.f32 %v445, 0.5
        %v548 = vmul.f32 %v450, 0.5
        %v549 = vmul.f32 %v455, 0.5
        %v550 = vmul.f32 %v460, 0.5
        %v551 = vmul.f32 %v465, 0.5
        %v552 = vmul.f32 %v470, 0.5
        %v553 = vmul.f32 %v475, 0.5
        %v554 = vmul.f32 %v480, 0.5
        %v555 = vmul.f32 %v485, 0.5
        %v556 = vmul.f32 %v490, 0.5
        %v557 = vmul.f32 %v495, 0.5
        %v558 = vmul.f32 %v500, 0.5
        %v559 = vmul.f32 %v505, 0.5
        %v560 = vmul.f32 %v510, 0.5
        %v561 = vmul.f32 %v515, 0.5
        %v562 = vmul.f32 %v520, 0.5
        %v563 = vmul.f32 %v525, 0.5
        %v564 = vmul.f32 %v530, 0.5
        %v565 = vmul.f32 %v375, 0.70710677
        %v566 = vmul.f32 %v380, 0.70710677
        %v567 = vmul.f32 %v385, 0.70710677
        %v568 = vmul.f32 %v390, 0.70710677
        %v569 = vmul.f32 %v395, 0.70710677
        %v570 = vmul.f32 %v400, 0.70710677
        %v571 = vmul.f32 %v405, 0.70710677
        %v572 = vmul.f32 %v410, 0.70710677
        %v573 = vmul.f32 %v415, 0.70710677
        %v574 = vmul.f32 %v420, 0.70710677
        %v575 = vmul.f32 %v425, 0.70710677
        %v576 = vmul.f32 %v430, 0.70710677
        %v577 = vmul.f32 %v435, 0.70710677
        %v578 = vmul.f32 %v440, 0.70710677
        %v579 = vmul.f32 %v445, 0.70710677
        %v580 = vmul.f32 %v450, 0.70710677
        %v581 = vmul.f32 %v455, 0.70710677
        %v582 = vmul.f32 %v460, 0.70710677
        %v583 = vmul.f32 %v465, 0.70710677
        %v584 = vmul.f32 %v470, 0.70710677
        %v585 = vmul.f32 %v475, 0.70710677
        %v586 = vmul.f32 %v480, 0.70710677
        %v587 = vmul.f32 %v485, 0.70710677
        %v588 = vmul.f32 %v490, 0.70710677
        %v589 = vmul.f32 %v495, 0.70710677
        %v590 = vmul.f32 %v500, 0.70710677
        %v591 = vmul.f32 %v505, 0.70710677
        %v592 = vmul.f32 %v510, 0.70710677
        %v593 = vmul.f32 %v515, 0.70710677
        %v594 = vmul.f32 %v520, 0.70710677
        %v595 = vmul.f32 %v525, 0.70710677
        %v596 = vmul.f32 %v530, 0.70710677
        %v597 = verf.f32.pop %v565
        %v598 = verf.f32.pop %v566
        %v599 = verf.f32.pop %v567
        %v600 = verf.f32.pop %v568
        %v601 = verf.f32.pop %v569
        %v602 = verf.f32.pop %v570
        %v603 = verf.f32.pop %v571
        %v604 = verf.f32.pop %v572
        %v605 = verf.f32.pop %v573
        %v606 = verf.f32.pop %v574
        %v607 = verf.f32.pop %v575
        %v608 = verf.f32.pop %v576
        %v609 = verf.f32.pop %v577
        %v610 = verf.f32.pop %v578
        %v611 = verf.f32.pop %v579
        %v612 = verf.f32.pop %v580
        %v613 = verf.f32.pop %v581
        %v614 = verf.f32.pop %v582
        %v615 = verf.f32.pop %v583
        %v616 = verf.f32.pop %v584
        %v617 = verf.f32.pop %v585
        %v618 = verf.f32.pop %v586
        %v619 = verf.f32.pop %v587
        %v620 = verf.f32.pop %v588
        %v621 = verf.f32.pop %v589
        %v622 = verf.f32.pop %v590
        %v623 = verf.f32.pop %v591
        %v624 = verf.f32.pop %v592
        %v625 = verf.f32.pop %v593
        %v626 = verf.f32.pop %v594
        %v627 = verf.f32.pop %v595
        %v628 = verf.f32.pop %v596
        %v629 = vadd.f32 %v597, 1.0
        %v630 = vadd.f32 %v598, 1.0
        %v631 = vadd.f32 %v599, 1.0
        %v632 = vadd.f32 %v600, 1.0
        %v633 = vadd.f32 %v601, 1.0
        %v634 = vadd.f32 %v602, 1.0
        %v635 = vadd.f32 %v603, 1.0
        %v636 = vadd.f32 %v604, 1.0
        %v637 = vadd.f32 %v605, 1.0
        %v638 = vadd.f32 %v606, 1.0
        %v639 = vadd.f32 %v607, 1.0
        %v640 = vadd.f32 %v608, 1.0
        %v641 = vadd.f32 %v609, 1.0
        %v642 = vadd.f32 %v610, 1.0
        %v643 = vadd.f32 %v611, 1.0
        %v644 = vadd.f32 %v612, 1.0
        %v645 = vadd.f32 %v613, 1.0
        %v646 = vadd.f32 %v614, 1.0
        %v647 = vadd.f32 %v615, 1.0
        %v648 = vadd.f32 %v616, 1.0
        %v649 = vadd.f32 %v617, 1.0
        %v650 = vadd.f32 %v618, 1.0
        %v651 = vadd.f32 %v619, 1.0
        %v652 = vadd.f32 %v620, 1.0
        %v653 = vadd.f32 %v621, 1.0
        %v654 = vadd.f32 %v622, 1.0
        %v655 = vadd.f32 %v623, 1.0
        %v656 = vadd.f32 %v624, 1.0
        %v657 = vadd.f32 %v625, 1.0
        %v658 = vadd.f32 %v626, 1.0
        %v659 = vadd.f32 %v627, 1.0
        %v660 = vadd.f32 %v628, 1.0
        %v661 = vmul.f32 %v533, %v629
        %v662 = vmul.f32 %v534, %v630
        %v663 = vmul.f32 %v535, %v631
        %v664 = vmul.f32 %v536, %v632
        %v665 = vmul.f32 %v537, %v633
        %v666 = vmul.f32 %v538, %v634
        %v667 = vmul.f32 %v539, %v635
        %v668 = vmul.f32 %v540, %v636
        %v669 = vmul.f32 %v541, %v637
        %v670 = vmul.f32 %v542, %v638
        %v671 = vmul.f32 %v543, %v639
        %v672 = vmul.f32 %v544, %v640
        %v673 = vmul.f32 %v545, %v641
        %v674 = vmul.f32 %v546, %v642
        %v675 = vmul.f32 %v547, %v643
        %v676 = vmul.f32 %v548, %v644
        %v677 = vmul.f32 %v549, %v645
        %v678 = vmul.f32 %v550, %v646
        %v679 = vmul.f32 %v551, %v647
        %v680 = vmul.f32 %v552, %v648
        %v681 = vmul.f32 %v553, %v649
        %v682 = vmul.f32 %v554, %v650
        %v683 = vmul.f32 %v555, %v651
        %v684 = vmul.f32 %v556, %v652
        %v685 = vmul.f32 %v557, %v653
        %v686 = vmul.f32 %v558, %v654
        %v687 = vmul.f32 %v559, %v655
        %v688 = vmul.f32 %v560, %v656
        %v689 = vmul.f32 %v561, %v657
        %v690 = vmul.f32 %v562, %v658
        %v691 = vmul.f32 %v563, %v659
        %v692 = vmul.f32 %v564, %v660
        %vm693 = vcmask 7168
        %694 = vst.msk [vmem:[%s208] sm:$0xff] %vm693, %v661
        %695 = vst.msk [vmem:[%s208 + $0x8] sm:$0xff] %vm693, %v662
        %696 = vst.msk [vmem:[%s208 + $0x10] sm:$0xff] %vm693, %v663
        %697 = vst.msk [vmem:[%s208 + $0x18] sm:$0xff] %vm693, %v664
        %698 = vst.msk [vmem:[%s208 + $0x20] sm:$0xff] %vm693, %v665
        %699 = vst.msk [vmem:[%s208 + $0x28] sm:$0xff] %vm693, %v666
        %700 = vst.msk [vmem:[%s208 + $0x30] sm:$0xff] %vm693, %v667
        %701 = vst.msk [vmem:[%s208 + $0x38] sm:$0xff] %vm693, %v668
        %702 = vst.msk [vmem:[%s208 + $0x40] sm:$0xff] %vm693, %v669
        %703 = vst.msk [vmem:[%s208 + $0x48] sm:$0xff] %vm693, %v670
        %704 = vst.msk [vmem:[%s208 + $0x50] sm:$0xff] %vm693, %v671
        %705 = vst.msk [vmem:[%s208 + $0x58] sm:$0xff] %vm693, %v672
        %706 = vst.msk [vmem:[%s208 + $0x60] sm:$0xff] %vm693, %v673
        %707 = vst.msk [vmem:[%s208 + $0x68] sm:$0xff] %vm693, %v674
        %708 = vst.msk [vmem:[%s208 + $0x70] sm:$0xff] %vm693, %v675
        %709 = vst.msk [vmem:[%s208 + $0x78] sm:$0xff] %vm693, %v676
        %710 = vst.msk [vmem:[%s208 + $0x80] sm:$0xff] %vm693, %v677
        %711 = vst.msk [vmem:[%s208 + $0x88] sm:$0xff] %vm693, %v678
        %712 = vst.msk [vmem:[%s208 + $0x90] sm:$0xff] %vm693, %v679
        %713 = vst.msk [vmem:[%s208 + $0x98] sm:$0xff] %vm693, %v680
        %714 = vst.msk [vmem:[%s208 + $0xa0] sm:$0xff] %vm693, %v681
        %715 = vst.msk [vmem:[%s208 + $0xa8] sm:$0xff] %vm693, %v682
        %716 = vst.msk [vmem:[%s208 + $0xb0] sm:$0xff] %vm693, %v683
        %717 = vst.msk [vmem:[%s208 + $0xb8] sm:$0xff] %vm693, %v684
        %718 = vst.msk [vmem:[%s208 + $0xc0] sm:$0xff] %vm693, %v685
        %719 = vst.msk [vmem:[%s208 + $0xc8] sm:$0xff] %vm693, %v686
        %720 = vst.msk [vmem:[%s208 + $0xd0] sm:$0xff] %vm693, %v687
        %721 = vst.msk [vmem:[%s208 + $0xd8] sm:$0xff] %vm693, %v688
        %722 = vst.msk [vmem:[%s208 + $0xe0] sm:$0xff] %vm693, %v689
        %723 = vst.msk [vmem:[%s208 + $0xe8] sm:$0xff] %vm693, %v690
        %724 = vst.msk [vmem:[%s208 + $0xf0] sm:$0xff] %vm693, %v691
        %725 = vst.msk [vmem:[%s208 + $0xf8] sm:$0xff] %vm693, %v692
        %s726 = smul.u32 32, %s19
        %p727 = scmp.lt.s32.totalorder %s726, 63
        %s728 = scalar_select %p727, %s726, 63
        %s729 = smul.addr %s728, 8
        %s730 = scalar_lea.vmem %s3, %s729
        // Predicated region
        $region41: #{_lambda_.1} parent=31 // pred_check
          %p731 = pneg %p105
        $region42: #{_lambda_.1} parent=31 // pred_check_branch
          %733 = sbr.rel (%p731) target = $region44
        $region43: #{_lambda_.1} parent=31 // pred_region
          %s734 = smul.u32 32, %s19
        $region44: #{_lambda_.1} parent=31 // pred_fallthru
          _
      $region32: #{_lambda_.1} parent=5 // pred_fallthru
        _
      %p735 = scmp.le.s32.totalorder 2, %s14
      // Predicated region
      $region45: #{_lambda_.1} parent=5 // pred_check
        %p736 = pneg %p735
      $region46: #{_lambda_.1} parent=5 // pred_check_branch
        %738 = sbr.rel (%p736) target = $region48
      $region47: #{_lambda_.1} parent=5 // pred_region
        %s739 = ssub.s32 %s14, 2
        // Predicated region
        $region49: #{_lambda_.1} parent=47 // pred_check
          %p740 = pneg %p111
        $region50: #{_lambda_.1} parent=47 // pred_check_branch
          %742 = sbr.rel (%p740) target = $region52
        $region51: #{_lambda_.1} parent=47 // pred_region
          %s743 = smul.u32 32, %s20
          %p744 = scmp.lt.s32.totalorder %s743, 63
          %s745 = scalar_select %p744, %s743, 63
          %s746 = smul.addr %s745, 8
          %s747 = scalar_lea.vmem %s3, %s746
        $region52: #{_lambda_.1} parent=47 // pred_fallthru
          _
      $region48: #{_lambda_.1} parent=5 // pred_fallthru
        _
    $region6: #{_lambda_.1} parent=1 // loop_footer
      %s18 = sadd.s32 1, %s14
    $region7: #{_lambda_.1} parent=1 // loop_footer_branch
      %13 = sbr.rel target = $region3
    $region8: #{_lambda_.1} parent=1 // loop_exit
      _
    %748 = vsyncpa [#allocation4], 1
    %s749 = scalar_lea.sflag [#allocation4], 1
    %750 = vsyncpa %s749, 1
    %751 = vsyncpa [#allocation6], 1

</llo_original>
